<compile_context>
chip_gen: v5e
topology: v5e:2x2
jax: 0.10.0
libtpu: 0.0.40
codegen_flags: <defaults>
</compile_context>

<pallas_src>
import jax
import jax.numpy as jnp
import numpy as np
from jax.experimental import pallas as pl
from jax.experimental.pallas import tpu as pltpu


def _sim_kernel(emb_ref, sim_ref):
    # emb_ref: (dt, B, F) f32
    # sim_ref: (dt, B, B) f32    (lane-sparse fallback for small B)
    #       or (dt, 1, B*B) f32  (lane-dense flattened layout, B*B % 128 == 0)
    emb = emb_ref[...]
    dt, B, _ = emb.shape
    # Batched matmul on the MXU, f32 accumulate, reproducible f32 precision.
    sim = jnp.einsum('dbf,dcf->dbc', emb, emb,
                     preferred_element_type=jnp.float32,
                     precision=jax.lax.Precision.HIGHEST)
    if sim_ref.shape == (dt, B, B):
        sim_ref[...] = sim
    else:
        # Lane-dense store: one unmasked full-lane row per domain.
        sim_ref[...] = sim.reshape(dt, 1, B * B)


def _vmem_budget_bytes():
    """Generation-aware VMEM budget (~40% of physical VMEM)."""
    try:
        phys = pltpu.get_tpu_info().vmem_capacity_bytes
    except Exception:
        phys = 64 << 20   # conservative fallback (v7x-sized VMEM)
    return int(phys * 0.4)


def _pick_dt(D, B, F, vmem_budget):
    """Domains per grid step.

    Per-domain footprint: double-buffered f32 input (B*F) and output (B*B)
    tiles plus the live f32 sim intermediate; 1.5x fudge for compiler
    temporaries / spill headroom.
    """
    per_domain = int(1.5 * 4 * (2 * B * F + 2 * B * B + B * B))
    dt = max(1, min(D, vmem_budget // max(1, per_domain)))
    # Keep at least 2 grid steps so the "parallel" domain axis can shard across
    # v7x's 2 TensorCores (costs one extra ~0.35us step on single-TC v5e/v6e).
    dt = min(dt, max(1, pl.cdiv(D, 2)))
    return int(dt)


def _pallas_similarity(semb):
    """sim[d] = semb[d] @ semb[d].T for every domain, batched on the MXU."""
    D, B, F = semb.shape
    budget = _vmem_budget_bytes()
    dt = _pick_dt(D, B, F, budget)
    num_blocks = pl.cdiv(D, dt)
    Dp = num_blocks * dt
    x = semb.astype(jnp.float32)
    if Dp != D:
        x = jnp.pad(x, ((0, Dp - D), (0, 0), (0, 0)))

    lane_dense = (B * B) % 128 == 0 and B < 128
    if lane_dense:
        out_shape = jax.ShapeDtypeStruct((Dp, 1, B * B), jnp.float32)
        out_spec = pl.BlockSpec((dt, 1, B * B), lambda d: (d, 0, 0))
    else:
        out_shape = jax.ShapeDtypeStruct((Dp, B, B), jnp.float32)
        out_spec = pl.BlockSpec((dt, B, B), lambda d: (d, 0, 0))

    sim = pl.pallas_call(
        _sim_kernel,
        out_shape=out_shape,
        grid=(num_blocks,),
        in_specs=[pl.BlockSpec((dt, B, F), lambda d: (d, 0, 0))],
        out_specs=out_spec,
        compiler_params=pltpu.CompilerParams(
            dimension_semantics=("parallel",),   # independent domains -> megacore
            vmem_limit_bytes=budget),
    )(x)
    return sim.reshape(Dp, B, B)[:D]


def _host_masks(labels_np, topk_np, B):
    # same[d,i,j] = label[d,i] == label[d,j];  nb[d,i,j] = (j in topk[d,i,:])
    same = labels_np[:, :, None] == labels_np[:, None, :]
    nb = (topk_np[:, :, :, None] ==
          np.arange(B)[None, None, None, :]).any(axis=2)
    return nb & same, nb & ~same          # pos_ok, neg_ok


def distance_layer_forward(semb, slabels, topk_ngh):
    """Reproduces DistanceLayer.forward (hardest=False).

    Returns (pos_dist, neg_dist, anc_embed, pos_embed, neg_embed): Python lists
    with one entry per non-empty domain (ragged lengths, matching the torch
    module's list-of-tensors return).  The ragged triplet assembly is pure
    indexing glue done on host from the dense kernel output.
    """
    D, B, F = semb.shape
    sim = jax.block_until_ready(_pallas_similarity(semb))
    sim = np.asarray(sim)
    labels_np = np.asarray(slabels)
    topk_np = np.asarray(topk_ngh)
    pos_ok, neg_ok = _host_masks(labels_np, topk_np, B)
    emb_np = np.asarray(semb, dtype=np.float32)

    pos_dist, neg_dist, anc_embed, pos_embed, neg_embed = [], [], [], [], []
    # TODO(synk): the torch reference enumerates neighbors via Python `set`
    # intersection (arbitrary ordering); here pairs are emitted in sorted
    # (anchor, same_nbr, diff_nbr) index order.
    for k in range(D):
        # torch quirk: (label==x).nonzero().squeeze() with exactly ONE index is
        # a 0-dim tensor -> the whole domain is skipped.
        npos = int((labels_np[k] == 1).sum())
        nneg = int((labels_np[k] == 0).sum())
        if npos == 1 or nneg == 1:
            continue
        mask3 = pos_ok[k][:, :, None] & neg_ok[k][:, None, :]   # [B, B, B]
        idx = np.argwhere(mask3)                                # lex (i, sn, dn)
        if idx.shape[0] == 0:
            continue
        i, sn, dn = idx[:, 0], idx[:, 1], idx[:, 2]
        pos_dist.append(sim[k, i, sn])
        neg_dist.append(sim[k, i, dn])
        anc_embed.append(emb_np[k, i])
        pos_embed.append(emb_np[k, sn])
        neg_embed.append(emb_np[k, dn])
    return pos_dist, neg_dist, anc_embed, pos_embed, neg_embed


def _numpy_reference(semb, slabels, topk, num_domains, batch_size):
    """Faithful numpy port of the torch forward (hardest=False)."""
    semb = np.asarray(semb, dtype=np.float32)
    slabels = np.asarray(slabels)
    topk = np.asarray(topk)
    pos_dist, neg_dist, anc_embed, pos_embed, neg_embed = [], [], [], [], []
    for k in range(num_domains):
        emb, label = semb[k], slabels[k]
        sim = emb @ emb.T
        pos_indices = np.nonzero(label == 1)[0]
        neg_indices = np.nonzero(label == 0)[0]
        # torch: .nonzero().squeeze() of a single index -> 0-dim -> skip domain
        if len(pos_indices) == 1 or len(neg_indices) == 1:
            continue
        pdist, ndist, aemb, pemb, nemb = [], [], [], [], []
        for i in range(batch_size):
            if label[i] == 1:
                same_idx, diff_idx = pos_indices, neg_indices
            else:
                same_idx, diff_idx = neg_indices, pos_indices
            same_nb = sorted(set(topk[k][i].tolist()) & set(same_idx.tolist()))
            diff_nb = sorted(set(topk[k][i].tolist()) & set(diff_idx.tolist()))
            if len(same_nb) == 0 or len(diff_nb) == 0:
                continue
            for sn in same_nb:
                for dn in diff_nb:
                    pdist.append(sim[i, sn])
                    ndist.append(sim[i, dn])
                    aemb.append(emb[i])
                    pemb.append(emb[sn])
                    nemb.append(emb[dn])
        if len(aemb) != 0:
            pos_dist.append(np.array(pdist, dtype=np.float32))
            neg_dist.append(np.array(ndist, dtype=np.float32))
            anc_embed.append(np.stack(aemb))
            pos_embed.append(np.stack(pemb))
            neg_embed.append(np.stack(nemb))
    return pos_dist, neg_dist, anc_embed, pos_embed, neg_embed


def _run_case(D, B, F, K, slabels):
    key = jax.random.PRNGKey(0)
    k_emb, k_nb = jax.random.split(key)
    semb = jax.random.normal(k_emb, (D, B, F), dtype=jnp.float32)
    topk_ngh = jax.random.randint(k_nb, (D, B, K), 0, B, dtype=jnp.int32)

    out = distance_layer_forward(semb, slabels, topk_ngh)
    ref = _numpy_reference(semb, slabels, topk_ngh, D, B)
    names = ["pos_dist", "neg_dist", "anc_embed", "pos_embed", "neg_embed"]
    for name, got_list, ref_list in zip(names, out, ref):
        assert len(got_list) == len(ref_list), (name, len(got_list), len(ref_list))
        for g, r in zip(got_list, ref_list):
            np.testing.assert_allclose(np.asarray(g), r, rtol=1e-5, atol=1e-5)


if __name__ == "__main__":
    # Case 1: D=3, B=8, F=32, K=4 — lane-sparse (dt,B,B) output path, domain
    # axis split into 2 "parallel" grid steps (dt=2, one zero-padded domain);
    # the last domain has exactly one negative label -> skipped (torch quirk).
    labels1 = jnp.array(
        [[1, 1, 1, 1, 0, 0, 0, 0],
         [1, 0, 1, 0, 1, 0, 1, 0],
         [1, 1, 1, 1, 1, 1, 1, 0]], dtype=jnp.int32)
    _run_case(3, 8, 32, 4, labels1)

    # Case 2: D=2, B=16 — B*B=256 is a multiple of 128, so the lane-dense
    # flattened (dt,1,B*B) output path is exercised.
    labels2 = jnp.array(
        [[1, 1, 1, 1, 1, 1, 1, 1, 1, 0, 0, 0, 0, 0, 0, 0],
         [1, 0, 1, 0, 1, 0, 1, 0, 1, 0, 1, 0, 1, 0, 1, 0]], dtype=jnp.int32)
    _run_case(2, 16, 32, 4, labels2)

    print("KERNEL_OK")
</pallas_src>

<mosaic_0001>
module attributes {stable_mosaic.version = 11 : i64} {
  func.func @_sim_kernel(%arg0: i32, %arg1: memref<2x8x32xf32, #tpu.memory_space<vmem>>, %arg2: memref<2x8x8xf32, #tpu.memory_space<vmem>>) attributes {dimension_semantics = [#tpu.dimension_semantics<parallel>], iteration_bounds = array<i64: 2>, scalar_prefetch = 0 : i64, scratch_operands = 0 : i64, tpu.core_type = #tpu.core_type<tc>, window_params = [{transform_indices = @transform_0, window_bounds = array<i64: 2, 8, 32>}, {transform_indices = @transform_1, window_bounds = array<i64: 2, 8, 8>}]} {
    %c0 = arith.constant 0 : index
    %c0_0 = arith.constant 0 : index
    %c0_1 = arith.constant 0 : index
    %0 = vector.load %arg1[%c0, %c0_0, %c0_1] : memref<2x8x32xf32, #tpu.memory_space<vmem>>, vector<2x8x32xf32>
    "tpu.trace_start"() <{level = 10 : i32, message = "dbf,dcf->dbc"}> : () -> ()
    %cst = arith.constant dense<0.000000e+00> : vector<2x8x8xf32>
    %1 = tpu.matmul %0, %0, %cst {dimension_numbers = #tpu.dot_dimension_numbers<[2], [2], [1], [1], [0, 0, 0, 1, 1, 1], [0], [0]>, precision = #tpu.contract_precision<fp32>} : vector<2x8x32xf32>, vector<2x8x32xf32>, vector<2x8x8xf32> -> vector<2x8x8xf32>
    "tpu.trace_stop"() : () -> ()
    %c0_2 = arith.constant 0 : index
    %c0_3 = arith.constant 0 : index
    %c0_4 = arith.constant 0 : index
    %2 = vector.load %arg2[%c0_2, %c0_3, %c0_4] : memref<2x8x8xf32, #tpu.memory_space<vmem>>, vector<2x8x8xf32>
    tpu.vector_store %arg2[%c0_2, %c0_3, %c0_4], %1 {strides = array<i32>} : memref<2x8x8xf32, #tpu.memory_space<vmem>>, vector<2x8x8xf32>,
    return
  }
  func.func @transform_0(%arg0: i32) -> (i32, i32, i32) {
    %c0_i32 = arith.constant 0 : i32
    %c0_i32_0 = arith.constant 0 : i32
    %c0_i32_1 = arith.constant 0 : i32
    return %arg0, %c0_i32, %c0_i32_0 : i32, i32, i32
  }
  func.func @transform_1(%arg0: i32) -> (i32, i32, i32) {
    %c0_i32 = arith.constant 0 : i32
    %c0_i32_0 = arith.constant 0 : i32
    %c0_i32_1 = arith.constant 0 : i32
    return %arg0, %c0_i32, %c0_i32_0 : i32, i32, i32
  }
}

</mosaic_0001>

<llo_original>
// kernel: tpu_custom_call.1
$region0: #{tpu_custom_call.1}
  #allocation0 [shape = 'u32[]', space=smem, size = 0x4, offset = 0x4, fixed_abs, tag = 'smem constant byte address 0x4 - core index']
  #allocation1 [shape = 'u32[72,128]{1,0:T(1,128)}', space=vmem, size = 0x9000, scoped, tag = 'internal scratch']
  %s0 = inlined_call_operand.hbm [shape: f32[4,8,32], index: 0, kind: input, shape index: {}]
  %s1 = inlined_call_operand.hbm [shape: f32[4,8,8], index: 1, kind: output, shape index: {}]
  %s2 = sld [smem:[#allocation0]]
  $region41: #{tpu_custom_call.1} parent=0
    _
  %s4 = ssub.s32 1, %s2
  %s5 = scalar_select 0, %s4, %s2
  $region1: #{tpu_custom_call.1} parent=0
    #allocation2 [shape = 'u8[16384]{0}', space=vmem, size = 0x4000, scoped, tag = 'input window, operand 0']
    #allocation3 [shape = 's32[2]{0}', space=sflag, size = 0x8, scoped, tag = 'scoped memory for tpu_custom_call.1']
    #allocation4 [shape = 's32[2]{0}', space=sflag, size = 0x8, scoped, tag = 'scoped memory for tpu_custom_call.1']
    #allocation5 [shape = 'u8[16384]{0}', space=vmem, size = 0x4000, scoped, tag = 'output window, operand 0']
    %6 = vsyncpa [#allocation3], 0
    %s7 = scalar_lea.sflag [#allocation3], 1
    %8 = vsyncpa %s7, 0
    %9 = vsyncpa [#allocation4], 0
    %s10 = scalar_lea.sflag [#allocation4], 1
    %11 = vsyncpa %s10, 0
    loop: start=0, step=1, limit=4
    $region2: #{tpu_custom_call.1} parent=1 // loop_pre_header
      _
    $region3: #{tpu_custom_call.1} parent=1 // loop_header
      %s13 = sphi 0, %s17
      %p14 = scmp.ge.s32.totalorder %s13, 4
      %s23 = sphi 0, %s25
      %s26 = sphi 0, %s23
      %s27 = sphi 0, %s26
      %s43 = sphi 0, %s27
      %s49 = sphi 0, %s51
      %s52 = sphi 0, %s49
      %s53 = sphi 0, %s52
      %s69 = sphi 0, %s53
    $region4: #{tpu_custom_call.1} parent=1 // loop_header_branch
      %16 = sbr.rel (%p14) target = $region8
    $region5: #{tpu_custom_call.1} parent=1 // loop_body
      %s18 = ssub.s32 %s13, 1
      %s19 = ssub.s32 %s13, 2
      %s20 = sadd.s32 %s13, 1
      %s21 = ssub.s32 %s13, %s20
      %p22 = scmp.eq.s32.totalorder %s21, 0
      %s24 = sadd.s32 %s23, 1
      %s25 = scalar_select %p22, %s23, %s24
      %p28 = pneg %p22
      %p29 = scmp.eq.s32.totalorder %s13, 1
      %p30 = por %p28, %p29
      %p31 = scmp.ne.s32.totalorder %s23, %s26
      %p32 = scmp.eq.s32.totalorder %s13, 0
      %p33 = por %p31, %p32
      %p34 = scmp.ne.s32.totalorder %s23, %s26
      %p35 = scmp.eq.s32.totalorder %s18, 1
      %p36 = por %p34, %p35
      %p37 = scmp.ne.s32.totalorder %s26, %s27
      %p38 = scmp.eq.s32.totalorder %s18, 0
      %p39 = por %p37, %p38
      %p40 = scmp.ne.s32.totalorder %s26, %s27
      %p41 = scmp.eq.s32.totalorder %s19, 1
      %p42 = por %p40, %p41
      %p44 = scmp.ne.s32.totalorder %s27, %s43
      %p45 = scmp.eq.s32.totalorder %s19, 0
      %p46 = por %p44, %p45
      %s47 = ssub.s32 %s13, %s20
      %p48 = scmp.eq.s32.totalorder %s47, 0
      %s50 = sadd.s32 %s49, 1
      %s51 = scalar_select %p48, %s49, %s50
      %p54 = pneg %p48
      %p55 = scmp.eq.s32.totalorder %s13, 1
      %p56 = por %p54, %p55
      %p57 = scmp.ne.s32.totalorder %s49, %s52
      %p58 = scmp.eq.s32.totalorder %s13, 0
      %p59 = por %p57, %p58
      %p60 = scmp.ne.s32.totalorder %s49, %s52
      %p61 = scmp.eq.s32.totalorder %s18, 1
      %p62 = por %p60, %p61
      %p63 = scmp.ne.s32.totalorder %s52, %s53
      %p64 = scmp.eq.s32.totalorder %s18, 0
      %p65 = por %p63, %p64
      %p66 = scmp.ne.s32.totalorder %s52, %s53
      %p67 = scmp.eq.s32.totalorder %s19, 1
      %p68 = por %p66, %p67
      %p70 = scmp.ne.s32.totalorder %s53, %s69
      %p71 = scmp.eq.s32.totalorder %s19, 0
      %p72 = por %p70, %p71
      %p73 = scmp.le.s32.totalorder 1, %s13
      %p74 = scmp.lt.s32.totalorder %s13, 3
      %p75 = pnand %p73, %p74
      %p76 = pneg %p75
      // Predicated region
      $region9: #{tpu_custom_call.1} parent=5 // pred_check
        _
      $region10: #{tpu_custom_call.1} parent=5 // pred_check_branch
        %78 = sbr.rel (%p75) target = $region12
      $region11: #{tpu_custom_call.1} parent=5 // pred_region
        %s79 = ssub.s32 %s13, 1
      $region12: #{tpu_custom_call.1} parent=5 // pred_fallthru
        _
      %p80 = scmp.lt.s32.totalorder %s13, 2
      // Predicated region
      $region13: #{tpu_custom_call.1} parent=5 // pred_check
        %p81 = pneg %p80
      $region14: #{tpu_custom_call.1} parent=5 // pred_check_branch
        %83 = sbr.rel (%p81) target = $region16
      $region15: #{tpu_custom_call.1} parent=5 // pred_region
        // Predicated region
        $region17: #{tpu_custom_call.1} parent=15 // pred_check
          %p84 = pneg %p33
        $region18: #{tpu_custom_call.1} parent=15 // pred_check_branch
          %86 = sbr.rel (%p84) target = $region20
        $region19: #{tpu_custom_call.1} parent=15 // pred_region
          %s87 = sand.u32 %s23, 1
          %s88 = scalar_lea.sflag [#allocation3], %s87
          %s89 = sand.u32 %s23, 1
          %s90 = smul.addr %s89, 16
          %s91 = scalar_lea.vmem [#allocation2], %s90
          %s92 = smul.u32 2, %s13
          %94 = vsyncadd %s88, 0
          %s95 = smul.addr %s92, 8
          %s96 = scalar_lea.hbm %s0, %s95
          %s97 = sshll.u32 %s96, 4
          %s98 = int_to_ptr.hbm [resolvable:$true] %s97
          %s99 = sshll.u32 %s91, 4
          %s100 = int_to_ptr.vmem [resolvable:$true] %s99
          %105 = dma.hbm_to_vmem [thread:$0]  %s98, 256, %s100, %s88, 128, 128, 8
        $region20: #{tpu_custom_call.1} parent=15 // pred_fallthru
          _
      $region16: #{tpu_custom_call.1} parent=5 // pred_fallthru
        _
      %p106 = scmp.le.s32.totalorder 1, %s13
      %p107 = scmp.lt.s32.totalorder %s13, 3
      %p108 = pnand %p106, %p107
      %p109 = pneg %p108
      // Predicated region
      $region21: #{tpu_custom_call.1} parent=5 // pred_check
        _
      $region22: #{tpu_custom_call.1} parent=5 // pred_check_branch
        %111 = sbr.rel (%p108) target = $region24
      $region23: #{tpu_custom_call.1} parent=5 // pred_region
        %s112 = ssub.s32 %s13, 1
        %s113 = sand.u32 %s26, 1
        %s114 = scalar_lea.sflag [#allocation3], %s113
        %s115 = sand.u32 %s26, 1
        %s116 = smul.addr %s115, 16
        %s117 = scalar_lea.vmem [#allocation2], %s116
        // Predicated region
        $region25: #{tpu_custom_call.1} parent=23 // pred_check
          %p118 = pneg %p39
        $region26: #{tpu_custom_call.1} parent=23 // pred_check_branch
          %120 = sbr.rel (%p118) target = $region28
        $region27: #{tpu_custom_call.1} parent=23 // pred_region
          %122 = dma.done %s114, 256
        $region28: #{tpu_custom_call.1} parent=23 // pred_fallthru
          _
        %s123 = sand.u32 %s26, 1
        %s124 = scalar_lea.sflag [#allocation3], %s123
        %s125 = sand.u32 %s26, 1
        %s126 = smul.addr %s125, 16
        %s127 = scalar_lea.vmem [#allocation2], %s126
        %p128 = pneg %p39
        %p129 = pneg %p36
        %p130 = pneg %p65
        %p131 = pneg %p62
        %s132 = sand.u32 %s52, 1
        %s133 = scalar_lea.sflag [#allocation4], %s132
        %s134 = sand.u32 %s52, 1
        %s135 = smul.addr %s134, 16
        %s136 = scalar_lea.vmem [#allocation5], %s135
        %s137 = smul.u32 2, %s18
        %s138 = smul.u32 2, %s18
        %v139 = vld [vmem:[%s117] sm:$0xff]
        %v140 = vld [vmem:[%s117 + $0x8] sm:$0xff]
        %vm141 = vcmask 261120
        %v143 = vsel %vm141, %v139, 0
        %145 = vmatpush.xpose.msra.mxu0 0.0
        %146 = vmatpush.xpose.msra.mxu0 0.0
        %147 = vmatpush.xpose.msra.mxu0 0.0
        %148 = vmatpush.xpose.msra.mxu0 0.0
        %149 = vmatpush.xpose.msra.mxu0 0.0
        %150 = vmatpush.xpose.msra.mxu0 0.0
        %151 = vmatpush.xpose.msra.mxu0 0.0
        %152 = vmatpush.xpose.msra.mxu0 0.0
        %153 = vmatpush.xpose.msra.mxu0 0.0
        %154 = vmatpush.xpose.msra.mxu0 0.0
        %155 = vmatpush.xpose.msra.mxu0 0.0
        %156 = vmatpush.xpose.msra.mxu0 0.0
        %157 = vmatpush.xpose.msra.mxu0 0.0
        %158 = vmatpush.xpose.msra.mxu0 0.0
        %159 = vmatpush.xpose.msra.mxu0 0.0
        %v160 = vand.u32 %v143, 4294901760
        %161 = vmatpush.xpose.msra.mxu0 %v160
        %v162 = vand.u32 %v143, 4294901760
        %v163 = vsub.f32 %v143, %v162
        %v164 = vand.u32 %v163, 4294901760
        %v165 = vsub.f32 %v163, %v164
        %v166 = vand.u32 %v165, 4294901760
        %167 = vmatmul.f32.gmra.mxu0 %v166
        %v168 = vpop.f32.mrf.mxu0
        %v169 = vadd.f32 0.0, %v168
        %170 = vdwg.mxu0
        %171 = vmatpush.xpose.msra.mxu0 0.0
        %172 = vmatpush.xpose.msra.mxu0 0.0
        %173 = vmatpush.xpose.msra.mxu0 0.0
        %174 = vmatpush.xpose.msra.mxu0 0.0
        %175 = vmatpush.xpose.msra.mxu0 0.0
        %176 = vmatpush.xpose.msra.mxu0 0.0
        %177 = vmatpush.xpose.msra.mxu0 0.0
        %178 = vmatpush.xpose.msra.mxu0 0.0
        %179 = vmatpush.xpose.msra.mxu0 0.0
        %180 = vmatpush.xpose.msra.mxu0 0.0
        %181 = vmatpush.xpose.msra.mxu0 0.0
        %182 = vmatpush.xpose.msra.mxu0 0.0
        %183 = vmatpush.xpose.msra.mxu0 0.0
        %184 = vmatpush.xpose.msra.mxu0 0.0
        %185 = vmatpush.xpose.msra.mxu0 0.0
        %v186 = vand.u32 %v143, 4294901760
        %v187 = vsub.f32 %v143, %v186
        %v188 = vand.u32 %v187, 4294901760
        %v189 = vsub.f32 %v187, %v188
        %v190 = vand.u32 %v189, 4294901760
        %191 = vmatpush.xpose.msra.mxu0 %v190
        %v192 = vand.u32 %v143, 4294901760
        %193 = vmatmul.f32.gmra.mxu0 %v192
        %v194 = vpop.f32.mrf.mxu0
        %v195 = vadd.f32 %v169, %v194
        %196 = vdwg.mxu0
        %197 = vmatpush.xpose.msra.mxu0 0.0
        %198 = vmatpush.xpose.msra.mxu0 0.0
        %199 = vmatpush.xpose.msra.mxu0 0.0
        %200 = vmatpush.xpose.msra.mxu0 0.0
        %201 = vmatpush.xpose.msra.mxu0 0.0
        %202 = vmatpush.xpose.msra.mxu0 0.0
        %203 = vmatpush.xpose.msra.mxu0 0.0
        %204 = vmatpush.xpose.msra.mxu0 0.0
        %205 = vmatpush.xpose.msra.mxu0 0.0
        %206 = vmatpush.xpose.msra.mxu0 0.0
        %207 = vmatpush.xpose.msra.mxu0 0.0
        %208 = vmatpush.xpose.msra.mxu0 0.0
        %209 = vmatpush.xpose.msra.mxu0 0.0
        %210 = vmatpush.xpose.msra.mxu0 0.0
        %211 = vmatpush.xpose.msra.mxu0 0.0
        %v212 = vand.u32 %v143, 4294901760
        %v213 = vsub.f32 %v143, %v212
        %214 = vmatpush.xpose.msra.mxu0 %v213
        %v215 = vand.u32 %v143, 4294901760
        %v216 = vsub.f32 %v143, %v215
        %217 = vmatmul.f32.gmra.mxu0 %v216
        %v218 = vpop.f32.mrf.mxu0
        %v219 = vadd.f32 %v195, %v218
        %220 = vdwg.mxu0
        %221 = vmatpush.xpose.msra.mxu0 0.0
        %222 = vmatpush.xpose.msra.mxu0 0.0
        %223 = vmatpush.xpose.msra.mxu0 0.0
        %224 = vmatpush.xpose.msra.mxu0 0.0
        %225 = vmatpush.xpose.msra.mxu0 0.0
        %226 = vmatpush.xpose.msra.mxu0 0.0
        %227 = vmatpush.xpose.msra.mxu0 0.0
        %228 = vmatpush.xpose.msra.mxu0 0.0
        %229 = vmatpush.xpose.msra.mxu0 0.0
        %230 = vmatpush.xpose.msra.mxu0 0.0
        %231 = vmatpush.xpose.msra.mxu0 0.0
        %232 = vmatpush.xpose.msra.mxu0 0.0
        %233 = vmatpush.xpose.msra.mxu0 0.0
        %234 = vmatpush.xpose.msra.mxu0 0.0
        %235 = vmatpush.xpose.msra.mxu0 0.0
        %v236 = vand.u32 %v143, 4294901760
        %237 = vmatpush.xpose.msra.mxu0 %v236
        %v238 = vand.u32 %v143, 4294901760
        %v239 = vsub.f32 %v143, %v238
        %v240 = vand.u32 %v239, 4294901760
        %241 = vmatmul.f32.gmra.mxu0 %v240
        %v242 = vpop.f32.mrf.mxu0
        %v243 = vadd.f32 %v219, %v242
        %244 = vdwg.mxu0
        %245 = vmatpush.xpose.msra.mxu0 0.0
        %246 = vmatpush.xpose.msra.mxu0 0.0
        %247 = vmatpush.xpose.msra.mxu0 0.0
        %248 = vmatpush.xpose.msra.mxu0 0.0
        %249 = vmatpush.xpose.msra.mxu0 0.0
        %250 = vmatpush.xpose.msra.mxu0 0.0
        %251 = vmatpush.xpose.msra.mxu0 0.0
        %252 = vmatpush.xpose.msra.mxu0 0.0
        %253 = vmatpush.xpose.msra.mxu0 0.0
        %254 = vmatpush.xpose.msra.mxu0 0.0
        %255 = vmatpush.xpose.msra.mxu0 0.0
        %256 = vmatpush.xpose.msra.mxu0 0.0
        %257 = vmatpush.xpose.msra.mxu0 0.0
        %258 = vmatpush.xpose.msra.mxu0 0.0
        %259 = vmatpush.xpose.msra.mxu0 0.0
        %v260 = vand.u32 %v143, 4294901760
        %v261 = vsub.f32 %v143, %v260
        %v262 = vand.u32 %v261, 4294901760
        %263 = vmatpush.xpose.msra.mxu0 %v262
        %v264 = vand.u32 %v143, 4294901760
        %265 = vmatmul.f32.gmra.mxu0 %v264
        %v266 = vpop.f32.mrf.mxu0
        %v267 = vadd.f32 %v243, %v266
        %268 = vdwg.mxu0
        %269 = vmatpush.xpose.msra.mxu0 0.0
        %270 = vmatpush.xpose.msra.mxu0 0.0
        %271 = vmatpush.xpose.msra.mxu0 0.0
        %272 = vmatpush.xpose.msra.mxu0 0.0
        %273 = vmatpush.xpose.msra.mxu0 0.0
        %274 = vmatpush.xpose.msra.mxu0 0.0
        %275 = vmatpush.xpose.msra.mxu0 0.0
        %276 = vmatpush.xpose.msra.mxu0 0.0
        %277 = vmatpush.xpose.msra.mxu0 0.0
        %278 = vmatpush.xpose.msra.mxu0 0.0
        %279 = vmatpush.xpose.msra.mxu0 0.0
        %280 = vmatpush.xpose.msra.mxu0 0.0
        %281 = vmatpush.xpose.msra.mxu0 0.0
        %282 = vmatpush.xpose.msra.mxu0 0.0
        %283 = vmatpush.xpose.msra.mxu0 0.0
        %v284 = vand.u32 %v143, 4294901760
        %285 = vmatpush.xpose.msra.mxu0 %v284
        %v286 = vand.u32 %v143, 4294901760
        %287 = vmatmul.f32.gmra.mxu0 %v286
        %v288 = vpop.f32.mrf.mxu0
        %v289 = vadd.f32 %v267, %v288
        %290 = vdwg.mxu0
        %v292 = vsel %vm141, %v140, 0
        %294 = vmatpush.xpose.msra.mxu0 0.0
        %295 = vmatpush.xpose.msra.mxu0 0.0
        %296 = vmatpush.xpose.msra.mxu0 0.0
        %297 = vmatpush.xpose.msra.mxu0 0.0
        %298 = vmatpush.xpose.msra.mxu0 0.0
        %299 = vmatpush.xpose.msra.mxu0 0.0
        %300 = vmatpush.xpose.msra.mxu0 0.0
        %301 = vmatpush.xpose.msra.mxu0 0.0
        %302 = vmatpush.xpose.msra.mxu0 0.0
        %303 = vmatpush.xpose.msra.mxu0 0.0
        %304 = vmatpush.xpose.msra.mxu0 0.0
        %305 = vmatpush.xpose.msra.mxu0 0.0
        %306 = vmatpush.xpose.msra.mxu0 0.0
        %307 = vmatpush.xpose.msra.mxu0 0.0
        %308 = vmatpush.xpose.msra.mxu0 0.0
        %v309 = vand.u32 %v292, 4294901760
        %310 = vmatpush.xpose.msra.mxu0 %v309
        %v311 = vand.u32 %v292, 4294901760
        %v312 = vsub.f32 %v292, %v311
        %v313 = vand.u32 %v312, 4294901760
        %v314 = vsub.f32 %v312, %v313
        %v315 = vand.u32 %v314, 4294901760
        %316 = vmatmul.f32.gmra.mxu0 %v315
        %v317 = vpop.f32.mrf.mxu0
        %v318 = vadd.f32 0.0, %v317
        %319 = vdwg.mxu0
        %320 = vmatpush.xpose.msra.mxu0 0.0
        %321 = vmatpush.xpose.msra.mxu0 0.0
        %322 = vmatpush.xpose.msra.mxu0 0.0
        %323 = vmatpush.xpose.msra.mxu0 0.0
        %324 = vmatpush.xpose.msra.mxu0 0.0
        %325 = vmatpush.xpose.msra.mxu0 0.0
        %326 = vmatpush.xpose.msra.mxu0 0.0
        %327 = vmatpush.xpose.msra.mxu0 0.0
        %328 = vmatpush.xpose.msra.mxu0 0.0
        %329 = vmatpush.xpose.msra.mxu0 0.0
        %330 = vmatpush.xpose.msra.mxu0 0.0
        %331 = vmatpush.xpose.msra.mxu0 0.0
        %332 = vmatpush.xpose.msra.mxu0 0.0
        %333 = vmatpush.xpose.msra.mxu0 0.0
        %334 = vmatpush.xpose.msra.mxu0 0.0
        %v335 = vand.u32 %v292, 4294901760
        %v336 = vsub.f32 %v292, %v335
        %v337 = vand.u32 %v336, 4294901760
        %v338 = vsub.f32 %v336, %v337
        %v339 = vand.u32 %v338, 4294901760
        %340 = vmatpush.xpose.msra.mxu0 %v339
        %v341 = vand.u32 %v292, 4294901760
        %342 = vmatmul.f32.gmra.mxu0 %v341
        %v343 = vpop.f32.mrf.mxu0
        %v344 = vadd.f32 %v318, %v343
        %345 = vdwg.mxu0
        %346 = vmatpush.xpose.msra.mxu0 0.0
        %347 = vmatpush.xpose.msra.mxu0 0.0
        %348 = vmatpush.xpose.msra.mxu0 0.0
        %349 = vmatpush.xpose.msra.mxu0 0.0
        %350 = vmatpush.xpose.msra.mxu0 0.0
        %351 = vmatpush.xpose.msra.mxu0 0.0
        %352 = vmatpush.xpose.msra.mxu0 0.0
        %353 = vmatpush.xpose.msra.mxu0 0.0
        %354 = vmatpush.xpose.msra.mxu0 0.0
        %355 = vmatpush.xpose.msra.mxu0 0.0
        %356 = vmatpush.xpose.msra.mxu0 0.0
        %357 = vmatpush.xpose.msra.mxu0 0.0
        %358 = vmatpush.xpose.msra.mxu0 0.0
        %359 = vmatpush.xpose.msra.mxu0 0.0
        %360 = vmatpush.xpose.msra.mxu0 0.0
        %v361 = vand.u32 %v292, 4294901760
        %v362 = vsub.f32 %v292, %v361
        %363 = vmatpush.xpose.msra.mxu0 %v362
        %v364 = vand.u32 %v292, 4294901760
        %v365 = vsub.f32 %v292, %v364
        %366 = vmatmul.f32.gmra.mxu0 %v365
        %v367 = vpop.f32.mrf.mxu0
        %v368 = vadd.f32 %v344, %v367
        %369 = vdwg.mxu0
        %370 = vmatpush.xpose.msra.mxu0 0.0
        %371 = vmatpush.xpose.msra.mxu0 0.0
        %372 = vmatpush.xpose.msra.mxu0 0.0
        %373 = vmatpush.xpose.msra.mxu0 0.0
        %374 = vmatpush.xpose.msra.mxu0 0.0
        %375 = vmatpush.xpose.msra.mxu0 0.0
        %376 = vmatpush.xpose.msra.mxu0 0.0
        %377 = vmatpush.xpose.msra.mxu0 0.0
        %378 = vmatpush.xpose.msra.mxu0 0.0
        %379 = vmatpush.xpose.msra.mxu0 0.0
        %380 = vmatpush.xpose.msra.mxu0 0.0
        %381 = vmatpush.xpose.msra.mxu0 0.0
        %382 = vmatpush.xpose.msra.mxu0 0.0
        %383 = vmatpush.xpose.msra.mxu0 0.0
        %384 = vmatpush.xpose.msra.mxu0 0.0
        %v385 = vand.u32 %v292, 4294901760
        %386 = vmatpush.xpose.msra.mxu0 %v385
        %v387 = vand.u32 %v292, 4294901760
        %v388 = vsub.f32 %v292, %v387
        %v389 = vand.u32 %v388, 4294901760
        %390 = vmatmul.f32.gmra.mxu0 %v389
        %v391 = vpop.f32.mrf.mxu0
        %v392 = vadd.f32 %v368, %v391
        %393 = vdwg.mxu0
        %394 = vmatpush.xpose.msra.mxu0 0.0
        %395 = vmatpush.xpose.msra.mxu0 0.0
        %396 = vmatpush.xpose.msra.mxu0 0.0
        %397 = vmatpush.xpose.msra.mxu0 0.0
        %398 = vmatpush.xpose.msra.mxu0 0.0
        %399 = vmatpush.xpose.msra.mxu0 0.0
        %400 = vmatpush.xpose.msra.mxu0 0.0
        %401 = vmatpush.xpose.msra.mxu0 0.0
        %402 = vmatpush.xpose.msra.mxu0 0.0
        %403 = vmatpush.xpose.msra.mxu0 0.0
        %404 = vmatpush.xpose.msra.mxu0 0.0
        %405 = vmatpush.xpose.msra.mxu0 0.0
        %406 = vmatpush.xpose.msra.mxu0 0.0
        %407 = vmatpush.xpose.msra.mxu0 0.0
        %408 = vmatpush.xpose.msra.mxu0 0.0
        %v409 = vand.u32 %v292, 4294901760
        %v410 = vsub.f32 %v292, %v409
        %v411 = vand.u32 %v410, 4294901760
        %412 = vmatpush.xpose.msra.mxu0 %v411
        %v413 = vand.u32 %v292, 4294901760
        %414 = vmatmul.f32.gmra.mxu0 %v413
        %v415 = vpop.f32.mrf.mxu0
        %v416 = vadd.f32 %v392, %v415
        %417 = vdwg.mxu0
        %418 = vmatpush.xpose.msra.mxu0 0.0
        %419 = vmatpush.xpose.msra.mxu0 0.0
        %420 = vmatpush.xpose.msra.mxu0 0.0
        %421 = vmatpush.xpose.msra.mxu0 0.0
        %422 = vmatpush.xpose.msra.mxu0 0.0
        %423 = vmatpush.xpose.msra.mxu0 0.0
        %424 = vmatpush.xpose.msra.mxu0 0.0
        %425 = vmatpush.xpose.msra.mxu0 0.0
        %426 = vmatpush.xpose.msra.mxu0 0.0
        %427 = vmatpush.xpose.msra.mxu0 0.0
        %428 = vmatpush.xpose.msra.mxu0 0.0
        %429 = vmatpush.xpose.msra.mxu0 0.0
        %430 = vmatpush.xpose.msra.mxu0 0.0
        %431 = vmatpush.xpose.msra.mxu0 0.0
        %432 = vmatpush.xpose.msra.mxu0 0.0
        %v433 = vand.u32 %v292, 4294901760
        %434 = vmatpush.xpose.msra.mxu0 %v433
        %v435 = vand.u32 %v292, 4294901760
        %436 = vmatmul.f32.gmra.mxu0 %v435
        %v437 = vpop.f32.mrf.mxu0
        %v438 = vadd.f32 %v416, %v437
        %439 = vdwg.mxu0
        %vm440 = vcmask 64512
        %441 = vst.msk [vmem:[%s136] sm:$0xff] %vm440, %v289
        %442 = vst.msk [vmem:[%s136 + $0x8] sm:$0xff] %vm440, %v438
        %s443 = sand.u32 %s52, 1
        %s444 = scalar_lea.sflag [#allocation4], %s443
        %s445 = sand.u32 %s52, 1
        %s446 = smul.addr %s445, 16
        %s447 = scalar_lea.vmem [#allocation5], %s446
        // Predicated region
        $region29: #{tpu_custom_call.1} parent=23 // pred_check
          %p448 = pneg %p62
        $region30: #{tpu_custom_call.1} parent=23 // pred_check_branch
          %450 = sbr.rel (%p448) target = $region32
        $region31: #{tpu_custom_call.1} parent=23 // pred_region
          %s451 = smul.u32 2, %s18
          %453 = vsyncadd %s444, 0
          %s454 = smul.addr %s451, 8
          %s455 = scalar_lea.hbm %s1, %s454
          %s456 = sshll.u32 %s447, 4
          %s457 = int_to_ptr.vmem [resolvable:$true] %s456
          %s458 = sshll.u32 %s455, 4
          %s459 = int_to_ptr.hbm [resolvable:$true] %s458
          %464 = dma.vmem_to_hbm [thread:$0]  %s457, 256, %s459, %s444, 128, 128, 8
        $region32: #{tpu_custom_call.1} parent=23 // pred_fallthru
          _
      $region24: #{tpu_custom_call.1} parent=5 // pred_fallthru
        _
      %p465 = scmp.le.s32.totalorder 2, %s13
      // Predicated region
      $region33: #{tpu_custom_call.1} parent=5 // pred_check
        %p466 = pneg %p465
      $region34: #{tpu_custom_call.1} parent=5 // pred_check_branch
        %468 = sbr.rel (%p466) target = $region36
      $region35: #{tpu_custom_call.1} parent=5 // pred_region
        %s469 = ssub.s32 %s13, 2
        // Predicated region
        $region37: #{tpu_custom_call.1} parent=35 // pred_check
          %p470 = pneg %p68
        $region38: #{tpu_custom_call.1} parent=35 // pred_check_branch
          %472 = sbr.rel (%p470) target = $region40
        $region39: #{tpu_custom_call.1} parent=35 // pred_region
          %s473 = sand.u32 %s53, 1
          %s474 = scalar_lea.sflag [#allocation4], %s473
          %s475 = sand.u32 %s53, 1
          %s476 = smul.addr %s475, 16
          %s477 = scalar_lea.vmem [#allocation5], %s476
          %479 = dma.done %s474, 256
        $region40: #{tpu_custom_call.1} parent=35 // pred_fallthru
          _
      $region36: #{tpu_custom_call.1} parent=5 // pred_fallthru
        _
    $region6: #{tpu_custom_call.1} parent=1 // loop_footer
      %s17 = sadd.s32 1, %s13
    $region7: #{tpu_custom_call.1} parent=1 // loop_footer_branch
      %12 = sbr.rel target = $region3
    $region8: #{tpu_custom_call.1} parent=1 // loop_exit
      _
    %480 = vsyncpa [#allocation3], 1
    %s481 = scalar_lea.sflag [#allocation3], 1
    %482 = vsyncpa %s481, 1
    %483 = vsyncpa [#allocation4], 1
    %s484 = scalar_lea.sflag [#allocation4], 1
    %485 = vsyncpa %s484, 1

</llo_original>
